<compile_context>
chip_gen: v5e
topology: v5e:2x2
jax: 0.10.0
libtpu: 0.0.40
codegen_flags: <defaults>
</compile_context>

<pallas_src>
import functools

import jax
import jax.numpy as jnp
from jax.experimental import pallas as pl
from jax.experimental.pallas import tpu as pltpu


# --------------------------------------------------------------------------
# Pallas kernel: one GRU cell step + Linear(H->V) + ReLU, gridded over V
# --------------------------------------------------------------------------
def _decoder_kernel(
    x_ref,       # (B, D+E)   f32
    h_ref,       # (B, H)     f32
    wi_ref,      # (D+E, 3H)  bf16  (packed input->gate weights, order r,z,n)
    wh_ref,      # (H, 3H)    bf16  (packed hidden->gate weights)
    bgate_ref,   # (1, 3H)    f32   ([b_ir+b_hr, b_iz+b_hz, b_in])
    bhn_ref,     # (1, H)     f32
    wout_ref,    # (H, TILE_V) bf16
    bout_ref,    # (1, TILE_V) f32
    pred_ref,    # (B, TILE_V) f32   output
    hnew_ref,    # (B, H)      f32   output (resident across vocab grid)
    h_scr,       # (B, H)      f32   VMEM scratch (persists across grid steps)
):
    j = pl.program_id(0)

    # --- GRU cell: compute once, on the first vocab tile ---
    @pl.when(j == 0)
    def _():
        H = h_ref.shape[-1]
        x = x_ref[...]
        h = h_ref[...]
        gi = (
            jnp.dot(x.astype(wi_ref.dtype), wi_ref[...],
                    preferred_element_type=jnp.float32)
            + bgate_ref[...]
        )
        gh = jnp.dot(h.astype(wh_ref.dtype), wh_ref[...],
                     preferred_element_type=jnp.float32)
        # PyTorch GRU gate math (gate order r, z, n), all elementwise in f32:
        r = jax.nn.sigmoid(gi[:, :H] + gh[:, :H])
        z = jax.nn.sigmoid(gi[:, H:2 * H] + gh[:, H:2 * H])
        n = jnp.tanh(gi[:, 2 * H:] + r * (gh[:, 2 * H:] + bhn_ref[...]))
        h_new = (1.0 - z) * n + z * h
        h_scr[...] = h_new
        hnew_ref[...] = h_new.astype(hnew_ref.dtype)

    # --- Output projection for this vocab tile + ReLU ---
    h_new = h_scr[...]
    logits = (
        jnp.dot(h_new.astype(wout_ref.dtype), wout_ref[...],
                preferred_element_type=jnp.float32)
        + bout_ref[...]
    )
    pred_ref[...] = jnp.maximum(logits, 0.0).astype(pred_ref.dtype)


def _pick_tile_v(V):
    """Largest lane-dense vocab tile (<=2048) that divides V; fallback = V."""
    if V % 128 == 0:
        for t in (2048, 1024, 512, 256, 128):
            if V % t == 0:
                return t
    return V


def _decoder_step(x, h0, wi_packed, wh_packed, bias_gates, bias_hn,
                  wout_t, b_out):
    """x: (B, D+E), h0: (B, H). Returns (pred (B,V), h_new (B,H))."""
    B, Din = x.shape
    H = h0.shape[-1]
    H3 = wi_packed.shape[-1]
    V = wout_t.shape[-1]
    tv = _pick_tile_v(V)
    grid = (V // tv,)

    pred, h_new = pl.pallas_call(
        _decoder_kernel,
        out_shape=(
            jax.ShapeDtypeStruct((B, V), jnp.float32),
            jax.ShapeDtypeStruct((B, H), jnp.float32),
        ),
        grid_spec=pltpu.PrefetchScalarGridSpec(
            num_scalar_prefetch=0,
            grid=grid,
            in_specs=[
                pl.BlockSpec((B, Din), lambda j: (0, 0)),    # x
                pl.BlockSpec((B, H), lambda j: (0, 0)),      # h0
                pl.BlockSpec((Din, H3), lambda j: (0, 0)),   # Wi packed
                pl.BlockSpec((H, H3), lambda j: (0, 0)),     # Wh packed
                pl.BlockSpec((1, H3), lambda j: (0, 0)),     # folded gate bias
                pl.BlockSpec((1, H), lambda j: (0, 0)),      # b_hn
                pl.BlockSpec((H, tv), lambda j: (0, j)),     # w_out tile
                pl.BlockSpec((1, tv), lambda j: (0, j)),     # b_out tile
            ],
            out_specs=(
                pl.BlockSpec((B, tv), lambda j: (0, j)),     # pred tile
                pl.BlockSpec((B, H), lambda j: (0, 0)),      # h_new (resident)
            ),
            scratch_shapes=[pltpu.VMEM((B, H), jnp.float32)],
        ),
        # Vocab axis must be sequential: the GRU runs only at j==0 and h_new
        # lives in a VMEM scratch shared across the vocab tiles.
        compiler_params=pltpu.CompilerParams(
            dimension_semantics=("arbitrary",)),
    )(x, h0, wi_packed, wh_packed, bias_gates, bias_hn, wout_t, b_out)
    return pred, h_new


# --------------------------------------------------------------------------
# Decoder module (parameters + forward), mirroring the PyTorch Decoder
# --------------------------------------------------------------------------
def init_decoder_params(key, image_features_dim, vocab_size, embed_size,
                        hidden_size, num_layers=1,
                        weight_dtype=jnp.bfloat16):
    assert num_layers == 1  # TODO(synk): multi-layer GRU stacking not implemented
    k_embed, k1, k2, k3, k4, k5, k6 = jax.random.split(key, 7)
    in_dim = image_features_dim + embed_size
    H = hidden_size
    bound = 1.0 / jnp.sqrt(hidden_size)

    def u(k, shape):
        return jax.random.uniform(k, shape, jnp.float32, -bound, bound)

    # PyTorch-layout raw weights (rows stacked per gate r, z, n)
    w_ih = u(k1, (3 * H, in_dim))
    w_hh = u(k2, (3 * H, H))
    b_ih = u(k3, (3 * H,))
    b_hh = u(k4, (3 * H,))
    w_out = u(k5, (vocab_size, H))
    b_out = u(k6, (vocab_size,))

    # ---- one-time packing / folding (keeps the hot path to 1 pallas_call) ----
    wi_packed = w_ih.T.astype(weight_dtype)                    # (D+E, 3H)
    wh_packed = w_hh.T.astype(weight_dtype)                    # (H, 3H)
    bias_gates = jnp.concatenate(
        [b_ih[:2 * H] + b_hh[:2 * H], b_ih[2 * H:]]).reshape(1, 3 * H)
    bias_hn = b_hh[2 * H:].reshape(1, H)
    wout_t = w_out.T.astype(weight_dtype)                      # (H, V)
    b_out2 = b_out.reshape(1, vocab_size)

    # NOTE: no python ints inside params (they would become tracers under jit).
    return {
        "embed": jax.random.normal(k_embed, (vocab_size, embed_size),
                                   jnp.float32),
        "wi_packed": wi_packed,
        "wh_packed": wh_packed,
        "bias_gates": bias_gates,
        "bias_hn": bias_hn,
        "wout_t": wout_t,
        "b_out": b_out2,
    }


@jax.jit
def decoder_forward(params, context_vector, word, hidden_state=None):
    """
    context_vector: (B, image_features_dim) float32
    word:           (B, 1) int32 token ids
    hidden_state:   (num_layers=1, B, H) or None
    returns (predictions (B, vocab_size), hidden_state (1, B, H))
    """
    embeddings = jnp.take(params["embed"], word, axis=0)        # (B, 1, E)
    embeddings = jnp.squeeze(embeddings, axis=1)                # (B, E)
    rnn_input = jnp.concatenate([context_vector, embeddings], axis=-1)

    B = rnn_input.shape[0]
    H = params["wh_packed"].shape[0]                            # static shape
    if hidden_state is None:
        hidden_state = jnp.zeros((1, B, H), jnp.float32)        # init_hidden
    h0 = hidden_state[0]                                        # (B, H)

    pred, h_new = _decoder_step(
        rnn_input, h0,
        params["wi_packed"], params["wh_packed"],
        params["bias_gates"], params["bias_hn"],
        params["wout_t"], params["b_out"],
    )
    return pred, h_new[None, :, :]                              # (B,V), (1,B,H)


# --------------------------------------------------------------------------
# Pure-JAX reference (f32 math on the same packed params)
# --------------------------------------------------------------------------
def _reference_forward(params, context_vector, word, hidden_state=None):
    emb = jnp.squeeze(jnp.take(params["embed"], word, axis=0), axis=1)
    x = jnp.concatenate([context_vector, emb], axis=-1)
    B = x.shape[0]
    H = params["wh_packed"].shape[0]
    h = (jnp.zeros((B, H), jnp.float32) if hidden_state is None
         else hidden_state[0])
    wi = params["wi_packed"].astype(jnp.float32)
    wh = params["wh_packed"].astype(jnp.float32)
    gi = x @ wi + params["bias_gates"]
    gh = h @ wh
    r = jax.nn.sigmoid(gi[:, :H] + gh[:, :H])
    z = jax.nn.sigmoid(gi[:, H:2 * H] + gh[:, H:2 * H])
    n = jnp.tanh(gi[:, 2 * H:] + r * (gh[:, 2 * H:] + params["bias_hn"]))
    h_new = (1.0 - z) * n + z * h
    wout = params["wout_t"].astype(jnp.float32)
    pred = jnp.maximum(h_new @ wout + params["b_out"], 0.0)
    return pred, h_new[None]


if __name__ == "__main__":
    image_features_dim = 32
    vocab_size = 128
    embed_size = 32
    hidden_size = 32
    batch = 2

    key = jax.random.PRNGKey(0)
    k_params, k_ctx, k_word = jax.random.split(key, 3)

    params = init_decoder_params(
        k_params, image_features_dim, vocab_size, embed_size, hidden_size
    )
    context_vector = jax.random.normal(k_ctx, (batch, image_features_dim),
                                       jnp.float32)
    word = jax.random.randint(k_word, (batch, 1), 0, vocab_size, jnp.int32)

    # Step 1 (hidden_state=None path)
    predictions, hidden_state = decoder_forward(params, context_vector, word)
    jax.block_until_ready((predictions, hidden_state))

    # Step 2 (explicit hidden_state path)
    predictions2, hidden_state2 = decoder_forward(
        params, context_vector, word, hidden_state)
    jax.block_until_ready((predictions2, hidden_state2))

    # sanity checks against pure-JAX reference (bf16 matmul inputs -> 2e-2 tol)
    ref_pred, ref_h = _reference_forward(params, context_vector, word)
    ref_pred2, ref_h2 = _reference_forward(params, context_vector, word, ref_h)

    assert predictions.shape == (batch, vocab_size)
    assert hidden_state.shape == (1, batch, hidden_size)
    assert jnp.allclose(predictions, ref_pred, atol=2e-2, rtol=2e-2)
    assert jnp.allclose(hidden_state, ref_h, atol=2e-2, rtol=2e-2)
    assert jnp.allclose(predictions2, ref_pred2, atol=2e-2, rtol=2e-2)
    assert jnp.allclose(hidden_state2, ref_h2, atol=2e-2, rtol=2e-2)

    print("KERNEL_OK")
</pallas_src>

<mosaic_0001>
module attributes {stable_mosaic.version = 11 : i64} {
  func.func @_decoder_kernel(%arg0: i32, %arg1: memref<2x64xf32, #tpu.memory_space<vmem>>, %arg2: memref<2x32xf32, #tpu.memory_space<vmem>>, %arg3: memref<64x96xbf16, #tpu.memory_space<vmem>>, %arg4: memref<32x96xbf16, #tpu.memory_space<vmem>>, %arg5: memref<1x96xf32, #tpu.memory_space<vmem>>, %arg6: memref<1x32xf32, #tpu.memory_space<vmem>>, %arg7: memref<32x128xbf16, #tpu.memory_space<vmem>>, %arg8: memref<1x128xf32, #tpu.memory_space<vmem>>, %arg9: memref<2x128xf32, #tpu.memory_space<vmem>>, %arg10: memref<2x32xf32, #tpu.memory_space<vmem>>, %arg11: memref<2x32xf32, #tpu.memory_space<vmem>>) attributes {dimension_semantics = [#tpu.dimension_semantics<arbitrary>], iteration_bounds = array<i64: 1>, scalar_prefetch = 0 : i64, scratch_operands = 1 : i64, tpu.core_type = #tpu.core_type<tc>, window_params = [{pipeline_mode = #tpu.pipeline_mode<synchronous>, transform_indices = @transform_0, window_bounds = array<i64: 2, 64>}, {pipeline_mode = #tpu.pipeline_mode<synchronous>, transform_indices = @transform_1, window_bounds = array<i64: 2, 32>}, {pipeline_mode = #tpu.pipeline_mode<synchronous>, transform_indices = @transform_2, window_bounds = array<i64: 64, 96>}, {pipeline_mode = #tpu.pipeline_mode<synchronous>, transform_indices = @transform_3, window_bounds = array<i64: 32, 96>}, {pipeline_mode = #tpu.pipeline_mode<synchronous>, transform_indices = @transform_4, window_bounds = array<i64: 1, 96>}, {pipeline_mode = #tpu.pipeline_mode<synchronous>, transform_indices = @transform_5, window_bounds = array<i64: 1, 32>}, {transform_indices = @transform_6, window_bounds = array<i64: 32, 128>}, {transform_indices = @transform_7, window_bounds = array<i64: 1, 128>}, {transform_indices = @transform_8, window_bounds = array<i64: 2, 128>}, {pipeline_mode = #tpu.pipeline_mode<synchronous>, transform_indices = @transform_9, window_bounds = array<i64: 2, 32>}]} {
    %c0_i32 = arith.constant 0 : i32
    %0 = arith.cmpi eq, %arg0, %c0_i32 : i32
    %1 = arith.extui %0 : i1 to i32
    %c0_i32_0 = arith.constant 0 : i32
    %2 = arith.cmpi ne, %1, %c0_i32_0 : i32
    scf.if %2 {
      %c0_9 = arith.constant 0 : index
      %c0_10 = arith.constant 0 : index
      %13 = vector.load %arg1[%c0_9, %c0_10] : memref<2x64xf32, #tpu.memory_space<vmem>>, vector<2x64xf32>
      %c0_11 = arith.constant 0 : index
      %c0_12 = arith.constant 0 : index
      %14 = vector.load %arg2[%c0_11, %c0_12] : memref<2x32xf32, #tpu.memory_space<vmem>>, vector<2x32xf32>
      %15 = arith.truncf %13 : vector<2x64xf32> to vector<2x64xbf16>
      %c0_13 = arith.constant 0 : index
      %c0_14 = arith.constant 0 : index
      %16 = vector.load %arg3[%c0_13, %c0_14] : memref<64x96xbf16, #tpu.memory_space<vmem>>, vector<64x96xbf16>
      %cst_15 = arith.constant dense<0.000000e+00> : vector<2x96xf32>
      %17 = tpu.matmul %15, %16, %cst_15 {dimension_numbers = #tpu.dot_dimension_numbers<[1], [0], [0], [1], [0, 0, 1, 1], [], []>} : vector<2x64xbf16>, vector<64x96xbf16>, vector<2x96xf32> -> vector<2x96xf32>
      %c0_16 = arith.constant 0 : index
      %c0_17 = arith.constant 0 : index
      %18 = vector.load %arg5[%c0_16, %c0_17] : memref<1x96xf32, #tpu.memory_space<vmem>>, vector<1x96xf32>
      %19 = vector.broadcast %18 : vector<1x96xf32> to vector<2x96xf32>
      %20 = arith.addf %17, %19 : vector<2x96xf32>
      %21 = arith.truncf %14 : vector<2x32xf32> to vector<2x32xbf16>
      %c0_18 = arith.constant 0 : index
      %c0_19 = arith.constant 0 : index
      %22 = vector.load %arg4[%c0_18, %c0_19] : memref<32x96xbf16, #tpu.memory_space<vmem>>, vector<32x96xbf16>
      %cst_20 = arith.constant dense<0.000000e+00> : vector<2x96xf32>
      %23 = tpu.matmul %21, %22, %cst_20 {dimension_numbers = #tpu.dot_dimension_numbers<[1], [0], [0], [1], [0, 0, 1, 1], [], []>} : vector<2x32xbf16>, vector<32x96xbf16>, vector<2x96xf32> -> vector<2x96xf32>
      %24 = vector.extract_strided_slice %20 {offsets = [0, 0], sizes = [2, 32], strides = [1, 1]} : vector<2x96xf32> to vector<2x32xf32>
      %25 = vector.extract_strided_slice %23 {offsets = [0, 0], sizes = [2, 32], strides = [1, 1]} : vector<2x96xf32> to vector<2x32xf32>
      %26 = arith.addf %24, %25 : vector<2x32xf32>
      %27 = arith.negf %26 : vector<2x32xf32>
      %28 = math.exp %27 : vector<2x32xf32>
      %cst_21 = arith.constant 1.000000e+00 : f32
      %29 = vector.broadcast %cst_21 : f32 to vector<2x32xf32>
      %30 = arith.addf %29, %28 : vector<2x32xf32>
      %31 = arith.divf %29, %30 : vector<2x32xf32>
      %32 = vector.extract_strided_slice %20 {offsets = [0, 32], sizes = [2, 32], strides = [1, 1]} : vector<2x96xf32> to vector<2x32xf32>
      %33 = vector.extract_strided_slice %23 {offsets = [0, 32], sizes = [2, 32], strides = [1, 1]} : vector<2x96xf32> to vector<2x32xf32>
      %34 = arith.addf %32, %33 : vector<2x32xf32>
      %35 = arith.negf %34 : vector<2x32xf32>
      %36 = math.exp %35 : vector<2x32xf32>
      %cst_22 = arith.constant 1.000000e+00 : f32
      %37 = vector.broadcast %cst_22 : f32 to vector<2x32xf32>
      %38 = arith.addf %37, %36 : vector<2x32xf32>
      %39 = arith.divf %37, %38 : vector<2x32xf32>
      %40 = vector.extract_strided_slice %20 {offsets = [0, 64], sizes = [2, 32], strides = [1, 1]} : vector<2x96xf32> to vector<2x32xf32>
      %41 = vector.extract_strided_slice %23 {offsets = [0, 64], sizes = [2, 32], strides = [1, 1]} : vector<2x96xf32> to vector<2x32xf32>
      %c0_23 = arith.constant 0 : index
      %c0_24 = arith.constant 0 : index
      %42 = vector.load %arg6[%c0_23, %c0_24] : memref<1x32xf32, #tpu.memory_space<vmem>>, vector<1x32xf32>
      %43 = vector.broadcast %42 : vector<1x32xf32> to vector<2x32xf32>
      %44 = arith.addf %41, %43 : vector<2x32xf32>
      %45 = arith.mulf %31, %44 : vector<2x32xf32>
      %46 = arith.addf %40, %45 : vector<2x32xf32>
      %47 = math.tanh %46 : vector<2x32xf32>
      %cst_25 = arith.constant 1.000000e+00 : f32
      %48 = vector.broadcast %cst_25 : f32 to vector<2x32xf32>
      %49 = arith.subf %48, %39 : vector<2x32xf32>
      %50 = arith.mulf %49, %47 : vector<2x32xf32>
      %51 = arith.mulf %39, %14 : vector<2x32xf32>
      %52 = arith.addf %50, %51 : vector<2x32xf32>
      %c0_26 = arith.constant 0 : index
      %c0_27 = arith.constant 0 : index
      %53 = vector.load %arg11[%c0_26, %c0_27] : memref<2x32xf32, #tpu.memory_space<vmem>>, vector<2x32xf32>
      tpu.vector_store %arg11[%c0_26, %c0_27], %52 {strides = array<i32>} : memref<2x32xf32, #tpu.memory_space<vmem>>, vector<2x32xf32>,
      %c0_28 = arith.constant 0 : index
      %c0_29 = arith.constant 0 : index
      %54 = vector.load %arg10[%c0_28, %c0_29] : memref<2x32xf32, #tpu.memory_space<vmem>>, vector<2x32xf32>
      tpu.vector_store %arg10[%c0_28, %c0_29], %52 {strides = array<i32>} : memref<2x32xf32, #tpu.memory_space<vmem>>, vector<2x32xf32>,
    } else {
    }
    %c0 = arith.constant 0 : index
    %c0_1 = arith.constant 0 : index
    %3 = vector.load %arg11[%c0, %c0_1] : memref<2x32xf32, #tpu.memory_space<vmem>>, vector<2x32xf32>
    %4 = arith.truncf %3 : vector<2x32xf32> to vector<2x32xbf16>
    %c0_2 = arith.constant 0 : index
    %c0_3 = arith.constant 0 : index
    %5 = vector.load %arg7[%c0_2, %c0_3] : memref<32x128xbf16, #tpu.memory_space<vmem>>, vector<32x128xbf16>
    %cst = arith.constant dense<0.000000e+00> : vector<2x128xf32>
    %6 = tpu.matmul %4, %5, %cst {dimension_numbers = #tpu.dot_dimension_numbers<[1], [0], [0], [1], [0, 0, 1, 1], [], []>} : vector<2x32xbf16>, vector<32x128xbf16>, vector<2x128xf32> -> vector<2x128xf32>
    %c0_4 = arith.constant 0 : index
    %c0_5 = arith.constant 0 : index
    %7 = vector.load %arg8[%c0_4, %c0_5] : memref<1x128xf32, #tpu.memory_space<vmem>>, vector<1x128xf32>
    %8 = vector.broadcast %7 : vector<1x128xf32> to vector<2x128xf32>
    %9 = arith.addf %6, %8 : vector<2x128xf32>
    %cst_6 = arith.constant 0.000000e+00 : f32
    %10 = vector.broadcast %cst_6 : f32 to vector<2x128xf32>
    %11 = arith.maximumf %9, %10 : vector<2x128xf32>
    %c0_7 = arith.constant 0 : index
    %c0_8 = arith.constant 0 : index
    %12 = vector.load %arg9[%c0_7, %c0_8] : memref<2x128xf32, #tpu.memory_space<vmem>>, vector<2x128xf32>
    tpu.vector_store %arg9[%c0_7, %c0_8], %11 {strides = array<i32>} : memref<2x128xf32, #tpu.memory_space<vmem>>, vector<2x128xf32>,
    return
  }
  func.func @transform_0(%arg0: i32) -> (i32, i32) {
    %c0_i32 = arith.constant 0 : i32
    %c0_i32_0 = arith.constant 0 : i32
    %c0_i32_1 = arith.constant 0 : i32
    return %c0_i32, %c0_i32_0 : i32, i32
  }
  func.func @transform_1(%arg0: i32) -> (i32, i32) {
    %c0_i32 = arith.constant 0 : i32
    %c0_i32_0 = arith.constant 0 : i32
    %c0_i32_1 = arith.constant 0 : i32
    return %c0_i32, %c0_i32_0 : i32, i32
  }
  func.func @transform_2(%arg0: i32) -> (i32, i32) {
    %c0_i32 = arith.constant 0 : i32
    %c0_i32_0 = arith.constant 0 : i32
    %c0_i32_1 = arith.constant 0 : i32
    return %c0_i32, %c0_i32_0 : i32, i32
  }
  func.func @transform_3(%arg0: i32) -> (i32, i32) {
    %c0_i32 = arith.constant 0 : i32
    %c0_i32_0 = arith.constant 0 : i32
    %c0_i32_1 = arith.constant 0 : i32
    return %c0_i32, %c0_i32_0 : i32, i32
  }
  func.func @transform_4(%arg0: i32) -> (i32, i32) {
    %c0_i32 = arith.constant 0 : i32
    %c0_i32_0 = arith.constant 0 : i32
    %c0_i32_1 = arith.constant 0 : i32
    return %c0_i32, %c0_i32_0 : i32, i32
  }
  func.func @transform_5(%arg0: i32) -> (i32, i32) {
    %c0_i32 = arith.constant 0 : i32
    %c0_i32_0 = arith.constant 0 : i32
    %c0_i32_1 = arith.constant 0 : i32
    return %c0_i32, %c0_i32_0 : i32, i32
  }
  func.func @transform_6(%arg0: i32) -> (i32, i32) {
    %c0_i32 = arith.constant 0 : i32
    %c0_i32_0 = arith.constant 0 : i32
    return %c0_i32, %arg0 : i32, i32
  }
  func.func @transform_7(%arg0: i32) -> (i32, i32) {
    %c0_i32 = arith.constant 0 : i32
    %c0_i32_0 = arith.constant 0 : i32
    return %c0_i32, %arg0 : i32, i32
  }
  func.func @transform_8(%arg0: i32) -> (i32, i32) {
    %c0_i32 = arith.constant 0 : i32
    %c0_i32_0 = arith.constant 0 : i32
    return %c0_i32, %arg0 : i32, i32
  }
  func.func @transform_9(%arg0: i32) -> (i32, i32) {
    %c0_i32 = arith.constant 0 : i32
    %c0_i32_0 = arith.constant 0 : i32
    %c0_i32_1 = arith.constant 0 : i32
    return %c0_i32, %c0_i32_0 : i32, i32
  }
}

</mosaic_0001>

<llo_original>
// kernel: squeeze.2
$region0: #{squeeze.2}
  #allocation0 [shape = 's32[1]{0}', space=sflag, size = 0x4, scoped, tag = 'scoped memory for squeeze.2']
  %s0 = inlined_call_operand.<no memory space> [shape: f32[], index: 0, kind: input, shape index: {}]
  %s1 = inlined_call_operand.vmem [shape: f32[2,32], index: 1, kind: output, shape index: {}]
  %v2 = vstv %s0
  %3 = vst [vmem:[%s1] sm:$0x3] %v2

// kernel: decoder_forward.1
$region0: #{decoder_forward.1}
  #allocation0 [shape = 'u32[]', space=smem, size = 0x4, offset = 0x4, fixed_abs, tag = 'smem constant byte address 0x4 - core index']
  #allocation1 [shape = 'u32[72,128]{1,0:T(1,128)}', space=vmem, size = 0x9000, scoped, tag = 'internal scratch']
  #allocation2 [shape = 'f32[2,32]{1,0:T(2,128)}', space=vmem, size = 0x400, scoped, tag = 'scratch operand']
  %s0 = inlined_call_operand.vmem [shape: f32[2,64], index: 0, kind: input, shape index: {}]
  %s1 = inlined_call_operand.vmem [shape: f32[2,32], index: 1, kind: input, shape index: {}]
  %s2 = inlined_call_operand.vmem [shape: bf16[64,96], index: 2, kind: input, shape index: {}]
  %s3 = inlined_call_operand.vmem [shape: bf16[32,96], index: 3, kind: input, shape index: {}]
  %s4 = inlined_call_operand.vmem [shape: f32[1,96], index: 4, kind: input, shape index: {}]
  %s5 = inlined_call_operand.vmem [shape: f32[1,32], index: 5, kind: input, shape index: {}]
  %s6 = inlined_call_operand.vmem [shape: bf16[32,128], index: 6, kind: input, shape index: {}]
  %s7 = inlined_call_operand.vmem [shape: f32[1,128], index: 7, kind: input, shape index: {}]
  %s8 = inlined_call_operand.hbm [shape: f32[2,128], index: 8, kind: output, shape index: {0}]
  %s9 = inlined_call_operand.hbm [shape: f32[2,32], index: 9, kind: output, shape index: {1}]
  %10 = xla_tuple %s8, %s9
  %s11 = sld [smem:[#allocation0]]
  $region54: #{decoder_forward.1} parent=0
    _
  %s13 = ssub.s32 1, %s11
  %s14 = scalar_select 0, %s13, %s11
  $region1: #{decoder_forward.1} parent=0
    #allocation3 [shape = 'u8[1024]{0}', space=vmem, size = 0x400, scoped, tag = 'output window, operand 0, single buffered']
    #allocation4 [shape = 's32[1]{0}', space=sflag, size = 0x4, scoped, tag = 'scoped memory for decoder_forward.1']
    #allocation5 [shape = 'u8[1024]{0}', space=vmem, size = 0x400, scoped, tag = 'output window, operand 1, single buffered']
    #allocation6 [shape = 's32[1]{0}', space=sflag, size = 0x4, scoped, tag = 'scoped memory for decoder_forward.1']
    %15 = vsyncpa [#allocation4], 0
    %16 = vsyncpa [#allocation6], 0
    // Predicated region
    $region2: #{decoder_forward.1} parent=1 // pred_check
      _
    $region3: #{decoder_forward.1} parent=1 // pred_check_branch
      %18 = sbr.rel (0) target = $region5
    $region4: #{decoder_forward.1} parent=1 // pred_region
      _
    $region5: #{decoder_forward.1} parent=1 // pred_fallthru
      _
    // Predicated region
    $region6: #{decoder_forward.1} parent=1 // pred_check
      _
    $region7: #{decoder_forward.1} parent=1 // pred_check_branch
      %20 = sbr.rel (0) target = $region9
    $region8: #{decoder_forward.1} parent=1 // pred_region
      _
    $region9: #{decoder_forward.1} parent=1 // pred_fallthru
      _
    // Predicated region
    $region10: #{decoder_forward.1} parent=1 // pred_check
      _
    $region11: #{decoder_forward.1} parent=1 // pred_check_branch
      %22 = sbr.rel (0) target = $region13
    $region12: #{decoder_forward.1} parent=1 // pred_region
      _
    $region13: #{decoder_forward.1} parent=1 // pred_fallthru
      _
    // Predicated region
    $region14: #{decoder_forward.1} parent=1 // pred_check
      _
    $region15: #{decoder_forward.1} parent=1 // pred_check_branch
      %24 = sbr.rel (0) target = $region17
    $region16: #{decoder_forward.1} parent=1 // pred_region
      _
    $region17: #{decoder_forward.1} parent=1 // pred_fallthru
      _
    // Predicated region
    $region18: #{decoder_forward.1} parent=1 // pred_check
      _
    $region19: #{decoder_forward.1} parent=1 // pred_check_branch
      %26 = sbr.rel (0) target = $region21
    $region20: #{decoder_forward.1} parent=1 // pred_region
      _
    $region21: #{decoder_forward.1} parent=1 // pred_fallthru
      _
    // Predicated region
    $region22: #{decoder_forward.1} parent=1 // pred_check
      _
    $region23: #{decoder_forward.1} parent=1 // pred_check_branch
      %28 = sbr.rel (0) target = $region25
    $region24: #{decoder_forward.1} parent=1 // pred_region
      _
    $region25: #{decoder_forward.1} parent=1 // pred_fallthru
      _
    // Predicated region
    $region26: #{decoder_forward.1} parent=1 // pred_check
      _
    $region27: #{decoder_forward.1} parent=1 // pred_check_branch
      %30 = sbr.rel (0) target = $region29
    $region28: #{decoder_forward.1} parent=1 // pred_region
      _
    $region29: #{decoder_forward.1} parent=1 // pred_fallthru
      _
    // Predicated region
    $region30: #{decoder_forward.1} parent=1 // pred_check
      _
    $region31: #{decoder_forward.1} parent=1 // pred_check_branch
      %32 = sbr.rel (0) target = $region33
    $region32: #{decoder_forward.1} parent=1 // pred_region
      _
    $region33: #{decoder_forward.1} parent=1 // pred_fallthru
      _
    %p34 = scmp.eq.s32.totalorder 0, 0
    // Predicated region
    $region34: #{decoder_forward.1} parent=1 // pred_check
      %p35 = pneg %p34
    $region35: #{decoder_forward.1} parent=1 // pred_check_branch
      %37 = sbr.rel (%p35) target = $region37
    $region36: #{decoder_forward.1} parent=1 // pred_region
      %v38 = vld [vmem:[%s0] sm:$0x3]
      %v39 = vld [vmem:[%s1] sm:$0x3]
      %v40 = vpack.c.bf16 %v38, %v38
      %v41 = vld [vmem:[%s2] sm:$0xf]
      %v42 = vld [vmem:[%s2 + $0x4] sm:$0xf]
      %v43 = vld [vmem:[%s2 + $0x8] sm:$0xf]
      %v44 = vld [vmem:[%s2 + $0xc] sm:$0xf]
      %v45 = vld [vmem:[%s2 + $0x10] sm:$0xf]
      %v46 = vld [vmem:[%s2 + $0x14] sm:$0xf]
      %v47 = vld [vmem:[%s2 + $0x18] sm:$0xf]
      %v48 = vld [vmem:[%s2 + $0x1c] sm:$0xf]
      %v49 = vld [vmem:[%s4] sm:$0x1]
      %v51 = vperm.slane %v49, 0
      %v61 = vunpack.c.l.b16 %v41
      %v62 = vunpack.c.l.b16 %v42
      %v63 = vunpack.c.l.b16 %v43
      %v64 = vunpack.c.l.b16 %v44
      %v65 = vunpack.c.l.b16 %v45
      %v66 = vunpack.c.l.b16 %v46
      %v67 = vunpack.c.l.b16 %v47
      %v68 = vunpack.c.l.b16 %v48
      %v69 = vpack.c.b16 %v62, %v61
      %v70 = vpack.c.b16 %v64, %v63
      %v71 = vpack.c.b16 %v66, %v65
      %v72 = vpack.c.b16 %v68, %v67
      %vm77 = vcmask 523264
      %v79 = vsel %vm77, %v40, 0
      %81 = vmatpush.bf16.msra.mxu0 0
      %82 = vmatpush.bf16.msra.mxu0 0
      %83 = vmatpush.bf16.msra.mxu0 0
      %84 = vmatpush.bf16.msra.mxu0 0
      %85 = vmatpush.bf16.msra.mxu0 %v72
      %86 = vmatpush.bf16.msra.mxu0 %v71
      %87 = vmatpush.bf16.msra.mxu0 %v70
      %88 = vmatpush.bf16.msra.mxu0 %v69
      %89 = vmatmul.bf16.gmra.mxu0 %v79
      %v90 = vpop.f32.mrf.mxu0
      %v91 = vadd.f32 %v51, %v90
      %v92 = vpop.f32.mrf.mxu0
      %93 = vdwg.mxu0
      %v94 = vpack.c.bf16 %v39, %v39
      %v95 = vld [vmem:[%s3] sm:$0xf]
      %v96 = vld [vmem:[%s3 + $0x4] sm:$0xf]
      %v97 = vld [vmem:[%s3 + $0x8] sm:$0xf]
      %v98 = vld [vmem:[%s3 + $0xc] sm:$0xf]
      %v103 = vunpack.c.l.b16 %v95
      %v104 = vunpack.c.l.b16 %v96
      %v105 = vunpack.c.l.b16 %v97
      %v106 = vunpack.c.l.b16 %v98
      %v107 = vpack.c.b16 %v104, %v103
      %v108 = vpack.c.b16 %v106, %v105
      %vm111 = vcmask 261120
      %v113 = vsel %vm111, %v94, 0
      %115 = vmatpush.bf16.msra.mxu0 0
      %116 = vmatpush.bf16.msra.mxu0 0
      %117 = vmatpush.bf16.msra.mxu0 0
      %118 = vmatpush.bf16.msra.mxu0 0
      %119 = vmatpush.bf16.msra.mxu0 0
      %120 = vmatpush.bf16.msra.mxu0 0
      %121 = vmatpush.bf16.msra.mxu0 %v108
      %122 = vmatpush.bf16.msra.mxu0 %v107
      %123 = vmatmul.bf16.gmra.mxu0 %v113
      %v124 = vpop.f32.mrf.mxu0
      %v125 = vadd.f32 0.0, %v124
      %v126 = vpop.f32.mrf.mxu0
      %127 = vdwg.mxu0
      %v128 = vadd.f32 %v91, %v125
      %v129 = vxor.u32 %v128, 2147483648
      %v130 = vmul.f32 %v129, 1.442695
      %v131 = vpow.pop %v130
      %v132 = vadd.f32 %v131, 1.0
      %v133 = vrcp.pop %v132
      %v134 = vmul.f32 %v132, %v133
      %v135 = vsub.f32 1.0, %v134
      %v136 = vmul.f32 %v133, %v135
      %v137 = vadd.f32 %v133, %v136
      %vm138 = vweird.f32 %v132
      %vm139 = vweird.f32 %v133
      %vm140 = vmor %vm138, %vm139
      %v141 = vsel %vm140, %v133, %v137
      %v142 = vand.u32 2147483647, %v132
      %vm143 = vcmp.eq.f32.partialorder %v142, 8.507059e+37
      %v144 = vand.u32 %v132, 2147483648
      %v145 = vor.u32 1.1754944e-38, %v144
      %v146 = vsel %vm143, %v145, %v141
      %v147 = vmul.f32 1.0, %v146
      %v148 = vld [vmem:[%s5] sm:$0x1]
      %v150 = vperm.slane %v148, 0
      %151 = vrot.lane.b32.xlu0 %v150, 64
      %v152 = vpop.permute.xlu0 %151
      %v154 = vadd.f32 %v125, %v152
      %156 = vrot.lane.b32.xlu0 %v154, 64
      %v157 = vpop.permute.xlu0 %156
      %v159 = vmul.f32 %v147, %v157
      %161 = vrot.lane.b32.xlu0 %v159, 64
      %v162 = vpop.permute.xlu0 %161
      %v164 = vadd.f32 %v91, %v162
      %v165 = vtanh.pop %v164
      %v166 = vsub.f32 1.0, %v147
      %168 = vrot.lane.b32.xlu0 %v165, 96
      %v169 = vpop.permute.xlu0 %168
      %v171 = vmul.f32 %v166, %v169
      %173 = vrot.lane.b32.xlu0 %v39, 32
      %v174 = vpop.permute.xlu0 %173
      %v176 = vmul.f32 %v147, %v174
      %v177 = vadd.f32 %v171, %v176
      %179 = vrot.lane.b32.xlu0 %v177, 96
      %v180 = vpop.permute.xlu0 %179
      %vm182 = vcmask 254976
      %183 = vst.msk [vmem:[#allocation2] sm:$0x3] %vm182, %v180
      %184 = vst.msk [vmem:[#allocation5] sm:$0x3] %vm182, %v180
    $region37: #{decoder_forward.1} parent=1 // pred_fallthru
      _
    %v185 = vld [vmem:[#allocation2] sm:$0x3]
    %v186 = vpack.c.bf16 %v185, %v185
    %v187 = vld [vmem:[%s6] sm:$0xf]
    %v188 = vld [vmem:[%s6 + $0x4] sm:$0xf]
    %v189 = vld [vmem:[%s6 + $0x8] sm:$0xf]
    %v190 = vld [vmem:[%s6 + $0xc] sm:$0xf]
    %v191 = vld [vmem:[%s7] sm:$0x1]
    %v193 = vperm.slane %v191, 0
    %v199 = vunpack.c.l.b16 %v187
    %v200 = vunpack.c.l.b16 %v188
    %v201 = vunpack.c.l.b16 %v189
    %v202 = vunpack.c.l.b16 %v190
    %v203 = vpack.c.b16 %v200, %v199
    %v204 = vpack.c.b16 %v202, %v201
    %vm207 = vcmask 261120
    %v209 = vsel %vm207, %v186, 0
    %211 = vmatpush.bf16.msra.mxu0 0
    %212 = vmatpush.bf16.msra.mxu0 0
    %213 = vmatpush.bf16.msra.mxu0 0
    %214 = vmatpush.bf16.msra.mxu0 0
    %215 = vmatpush.bf16.msra.mxu0 0
    %216 = vmatpush.bf16.msra.mxu0 0
    %217 = vmatpush.bf16.msra.mxu0 %v204
    %218 = vmatpush.bf16.msra.mxu0 %v203
    %219 = vmatmul.bf16.gmra.mxu0 %v209
    %v220 = vpop.f32.mrf.mxu0
    %v221 = vadd.f32 %v193, %v220
    %v222 = vpop.f32.mrf.mxu0
    %223 = vdwg.mxu0
    %v224 = vmax.f32 %v221, 0.0
    %225 = vst [vmem:[#allocation3] sm:$0x3] %v224
    // Predicated region
    $region38: #{decoder_forward.1} parent=1 // pred_check
      _
    $region39: #{decoder_forward.1} parent=1 // pred_check_branch
      %227 = sbr.rel (0) target = $region41
    $region40: #{decoder_forward.1} parent=1 // pred_region
      %229 = vsyncadd [#allocation4], 0
      %s231 = sshll.u32 [#allocation3], 4
      %s232 = int_to_ptr.vmem [resolvable:$true] %s231
      %s233 = sshll.u32 %s8, 4
      %s234 = int_to_ptr.hbm [resolvable:$true] %s233
      %236 = dma.vmem_to_hbm [thread:$0]  %s232, 32, %s234, [#allocation4]
    $region41: #{decoder_forward.1} parent=1 // pred_fallthru
      _
    // Predicated region
    $region42: #{decoder_forward.1} parent=1 // pred_check
      _
    $region43: #{decoder_forward.1} parent=1 // pred_check_branch
      %238 = sbr.rel (0) target = $region45
    $region44: #{decoder_forward.1} parent=1 // pred_region
      %240 = vsyncadd [#allocation6], 0
      %s242 = sshll.u32 [#allocation5], 4
      %s243 = int_to_ptr.vmem [resolvable:$true] %s242
      %s244 = sshll.u32 %s9, 4
      %s245 = int_to_ptr.hbm [resolvable:$true] %s244
      %247 = dma.vmem_to_hbm [thread:$0]  %s243, 32, %s245, [#allocation6]
    $region45: #{decoder_forward.1} parent=1 // pred_fallthru
      _
    // Predicated region
    $region46: #{decoder_forward.1} parent=1 // pred_check
      _
    $region47: #{decoder_forward.1} parent=1 // pred_check_branch
      %249 = sbr.rel (0) target = $region49
    $region48: #{decoder_forward.1} parent=1 // pred_region
      %251 = dma.done [#allocation4], 32
    $region49: #{decoder_forward.1} parent=1 // pred_fallthru
      _
    // Predicated region
    $region50: #{decoder_forward.1} parent=1 // pred_check
      _
    $region51: #{decoder_forward.1} parent=1 // pred_check_branch
      %253 = sbr.rel (0) target = $region53
    $region52: #{decoder_forward.1} parent=1 // pred_region
      %255 = dma.done [#allocation6], 32
    $region53: #{decoder_forward.1} parent=1 // pred_fallthru
      _
    %256 = vsyncpa [#allocation4], 1
    %257 = vsyncpa [#allocation6], 1

</llo_original>
